<compile_context>
chip_gen: v7x
topology: tpu7x:2x2x1
jax: 0.10.0
libtpu: 0.0.40
codegen_flags: <defaults>
</compile_context>

<pallas_src>
import functools
import math
from types import SimpleNamespace

import jax
import jax.numpy as jnp
from jax.experimental import pallas as pl
from jax.experimental.pallas import tpu as pltpu


LANE = 128


# ----------------------------------------------------------------------------
# get_hidden_layer_sizes: not provided in the snippet; use linear interpolation
# between n_features and embedding_dim (deterministic).
# TODO(synk): replace with the project's exact get_hidden_layer_sizes if it differs.
# ----------------------------------------------------------------------------
def get_hidden_layer_sizes(n_in, n_out, n_hidden):
    if n_hidden <= 0:
        return []
    return [
        int(round(n_in + (n_out - n_in) * (i + 1) / (n_hidden + 1)))
        for i in range(n_hidden)
    ]


def _round_up(x, m):
    return ((x + m - 1) // m) * m


# ----------------------------------------------------------------------------
# Fused Pallas kernel: all FC layers applied to one (TM, P) activation tile.
# ----------------------------------------------------------------------------
def encoder_kernel(x_ref, w_ref, b_ref, o_ref, *, n_layers):
    """x_ref: (TM, P) bf16 zero-padded input tile
       w_ref: (L, P, P) bf16 zero-padded weights (in, out), VMEM-resident
       b_ref: (L, 1, P) f32 zero-padded biases, VMEM-resident
       o_ref: (TM, P) f32 lane-dense padded output tile
    """
    h = x_ref[...]                                               # bf16 (TM, P)
    # Static unroll over the small fixed number of layers.
    for l in range(n_layers):
        y = jnp.dot(h, w_ref[l], preferred_element_type=jnp.float32)  # MXU bf16, f32 acc
        y = y + b_ref[l]                                          # f32 bias broadcast (VPU)
        if l < n_layers - 1:
            y = jnp.where(y >= 0, y, 0.2 * y)                     # LeakyReLU(0.2) in f32
            h = y.astype(jnp.bfloat16)                            # bf16 for next MXU pass
        else:
            o_ref[...] = y                                        # final layer: linear, f32 out


# ----------------------------------------------------------------------------
# DNN_Encoder in JAX/Pallas
# ----------------------------------------------------------------------------
class DNNEncoderPallas:
    def __init__(self, seq_len, args, n_features, embedding_dim=16, key=None):
        self.args = args
        self.seq_len = seq_len
        self.n_features = n_features
        self.embedding_dim = embedding_dim

        hidden_sizes = get_hidden_layer_sizes(n_features, embedding_dim, args.n_layer - 1)
        layer_sizes = [n_features] + hidden_sizes + [embedding_dim]
        self.n_layers = len(layer_sizes) - 1
        P = _round_up(max(layer_sizes), LANE)
        self.padded_width = P

        if key is None:
            key = jax.random.PRNGKey(0)

        self.params_f32 = []      # unpadded (w_t, b, apply_act) for the pure-JAX reference
        w_pad_list, b_pad_list = [], []
        n_hidden = len(hidden_sizes)
        for idx, (in_size, out_size) in enumerate(zip(layer_sizes[:-1], layer_sizes[1:])):
            key, kw, kb = jax.random.split(key, 3)
            # Deterministic init mimicking nn.Linear default (uniform +/- 1/sqrt(fan_in)).
            bound = 1.0 / math.sqrt(in_size)
            w = jax.random.uniform(kw, (out_size, in_size), jnp.float32, -bound, bound)
            b = jax.random.uniform(kb, (out_size,), jnp.float32, -bound, bound)
            apply_act = idx < n_hidden          # hidden -> LeakyReLU(0.2); last -> identity
            w_t = jnp.transpose(w)              # (in, out)
            self.params_f32.append((w_t, b[None, :], apply_act))
            w_pad_list.append(jnp.pad(w_t, ((0, P - in_size), (0, P - out_size))))
            b_pad_list.append(jnp.pad(b[None, :], ((0, 0), (0, P - out_size))))

        # Stacked, padded, VMEM-resident parameters for the fused kernel.
        self.w_stack = jnp.stack(w_pad_list).astype(jnp.bfloat16)   # (L, P, P)
        self.b_stack = jnp.stack(b_pad_list).astype(jnp.float32)    # (L, 1, P)

    def __call__(self, x):
        B = self.args.batch_size
        # Matches: x = x.reshape((batch_size, seq_len, n_features))
        x = x.reshape((B, self.seq_len, self.n_features))
        M = B * self.seq_len
        P = self.padded_width
        L = self.n_layers

        # Row tiling: large tiles for pipelining, never bigger than the (padded) array.
        if M <= 512:
            tm = _round_up(M, 8)
            m_pad = tm
        else:
            tm = 512
            m_pad = _round_up(M, tm)

        x2 = x.reshape((M, self.n_features)).astype(jnp.bfloat16)
        x_pad = jnp.pad(x2, ((0, m_pad - M), (0, P - self.n_features)))   # zero-padded lanes/rows

        kernel = functools.partial(encoder_kernel, n_layers=L)
        out_padded = pl.pallas_call(
            kernel,
            out_shape=jax.ShapeDtypeStruct((m_pad, P), jnp.float32),
            grid=(m_pad // tm,),
            in_specs=[
                pl.BlockSpec((tm, P), lambda i: (i, 0)),        # activation tile (pipelined)
                pl.BlockSpec((L, P, P), lambda i: (0, 0, 0)),   # weights: resident across grid
                pl.BlockSpec((L, 1, P), lambda i: (0, 0, 0)),   # biases: resident across grid
            ],
            out_specs=pl.BlockSpec((tm, P), lambda i: (i, 0)),  # lane-dense padded output
            compiler_params=pltpu.CompilerParams(
                dimension_semantics=("parallel",),              # shard rows across TCs on v7x
                vmem_limit_bytes=32 * 1024 * 1024,              # safe on v5e/v6e/v7x
            ),
        )(x_pad, self.w_stack, self.b_stack)

        return out_padded[:M, : self.embedding_dim].reshape(
            (B, self.seq_len, self.embedding_dim)
        )


# ----------------------------------------------------------------------------
# Pure-JAX reference (mirrors the kernel's bf16 MXU operands / f32 accumulation)
# ----------------------------------------------------------------------------
def reference_forward(enc, x):
    B = enc.args.batch_size
    y = x.reshape((B, enc.seq_len, enc.n_features)).astype(jnp.float32)
    y = y.reshape((-1, enc.n_features))
    for (w_t, b, apply_act) in enc.params_f32:
        y = jnp.dot(
            y.astype(jnp.bfloat16).astype(jnp.float32),
            w_t.astype(jnp.bfloat16).astype(jnp.float32),
            preferred_element_type=jnp.float32,
        ) + b
        if apply_act:
            y = jnp.where(y >= 0, y, 0.2 * y)
    return y.reshape((B, enc.seq_len, enc.embedding_dim))


if __name__ == "__main__":
    # Small, module-consistent shapes.
    batch_size = 2
    seq_len = 8
    n_features = 32
    embedding_dim = 16
    args = SimpleNamespace(batch_size=batch_size, n_layer=3)

    key = jax.random.PRNGKey(0)
    k_in, k_par = jax.random.split(key)

    enc = DNNEncoderPallas(seq_len, args, n_features, embedding_dim, key=k_par)

    # Input as it would arrive pre-reshape (flat features); forward reshapes it.
    x = jax.random.normal(k_in, (batch_size, seq_len * n_features), jnp.float32)

    out = enc(x)
    out = jax.block_until_ready(out)

    ref = reference_forward(enc, x)
    assert out.shape == (batch_size, seq_len, embedding_dim)
    assert jnp.allclose(out, ref, atol=2e-3, rtol=2e-3), (
        f"max abs err {jnp.max(jnp.abs(out - ref))}"
    )

    print("KERNEL_OK")
</pallas_src>

<mosaic_0001>
module attributes {stable_mosaic.version = 11 : i64} {
  func.func @encoder_kernel(%arg0: i32, %arg1: memref<16x128xbf16, #tpu.memory_space<vmem>>, %arg2: memref<3x128x128xbf16, #tpu.memory_space<vmem>>, %arg3: memref<3x1x128xf32, #tpu.memory_space<vmem>>, %arg4: memref<16x128xf32, #tpu.memory_space<vmem>>) attributes {dimension_semantics = [#tpu.dimension_semantics<parallel>], iteration_bounds = array<i64: 1>, scalar_prefetch = 0 : i64, scratch_operands = 0 : i64, tpu.core_type = #tpu.core_type<tc>, window_params = [{transform_indices = @transform_0, window_bounds = array<i64: 16, 128>}, {pipeline_mode = #tpu.pipeline_mode<synchronous>, transform_indices = @transform_1, window_bounds = array<i64: 3, 128, 128>}, {pipeline_mode = #tpu.pipeline_mode<synchronous>, transform_indices = @transform_2, window_bounds = array<i64: 3, 1, 128>}, {transform_indices = @transform_3, window_bounds = array<i64: 16, 128>}]} {
    %c0 = arith.constant 0 : index
    %c0_0 = arith.constant 0 : index
    %0 = vector.load %arg1[%c0, %c0_0] : memref<16x128xbf16, #tpu.memory_space<vmem>>, vector<16x128xbf16>
    %c0_1 = arith.constant 0 : index
    %c0_2 = arith.constant 0 : index
    %c0_3 = arith.constant 0 : index
    %1 = vector.load %arg2[%c0_1, %c0_2, %c0_3] : memref<3x128x128xbf16, #tpu.memory_space<vmem>>, vector<1x128x128xbf16>
    %2 = vector.shape_cast %1 : vector<1x128x128xbf16> to vector<128x128xbf16>
    %cst = arith.constant dense<0.000000e+00> : vector<16x128xf32>
    %3 = tpu.matmul %0, %2, %cst {dimension_numbers = #tpu.dot_dimension_numbers<[1], [0], [0], [1], [0, 0, 1, 1], [], []>} : vector<16x128xbf16>, vector<128x128xbf16>, vector<16x128xf32> -> vector<16x128xf32>
    %c0_4 = arith.constant 0 : index
    %c0_5 = arith.constant 0 : index
    %c0_6 = arith.constant 0 : index
    %4 = vector.load %arg3[%c0_4, %c0_5, %c0_6] : memref<3x1x128xf32, #tpu.memory_space<vmem>>, vector<1x1x128xf32>
    %5 = vector.shape_cast %4 : vector<1x1x128xf32> to vector<1x128xf32>
    %6 = vector.broadcast %5 : vector<1x128xf32> to vector<16x128xf32>
    %7 = arith.addf %3, %6 : vector<16x128xf32>
    %cst_7 = arith.constant 0.000000e+00 : f32
    %8 = vector.broadcast %cst_7 : f32 to vector<16x128xf32>
    %9 = arith.cmpf oge, %7, %8 : vector<16x128xf32>
    %cst_8 = arith.constant 2.000000e-01 : f32
    %10 = vector.broadcast %cst_8 : f32 to vector<16x128xf32>
    %11 = arith.mulf %10, %7 : vector<16x128xf32>
    %12 = arith.select %9, %7, %11 : vector<16x128xi1>, vector<16x128xf32>
    %13 = arith.truncf %12 : vector<16x128xf32> to vector<16x128xbf16>
    %c1 = arith.constant 1 : index
    %c0_9 = arith.constant 0 : index
    %c0_10 = arith.constant 0 : index
    %14 = vector.load %arg2[%c1, %c0_9, %c0_10] : memref<3x128x128xbf16, #tpu.memory_space<vmem>>, vector<1x128x128xbf16>
    %15 = vector.shape_cast %14 : vector<1x128x128xbf16> to vector<128x128xbf16>
    %cst_11 = arith.constant dense<0.000000e+00> : vector<16x128xf32>
    %16 = tpu.matmul %13, %15, %cst_11 {dimension_numbers = #tpu.dot_dimension_numbers<[1], [0], [0], [1], [0, 0, 1, 1], [], []>} : vector<16x128xbf16>, vector<128x128xbf16>, vector<16x128xf32> -> vector<16x128xf32>
    %c1_12 = arith.constant 1 : index
    %c0_13 = arith.constant 0 : index
    %c0_14 = arith.constant 0 : index
    %17 = vector.load %arg3[%c1_12, %c0_13, %c0_14] : memref<3x1x128xf32, #tpu.memory_space<vmem>>, vector<1x1x128xf32>
    %18 = vector.shape_cast %17 : vector<1x1x128xf32> to vector<1x128xf32>
    %19 = vector.broadcast %18 : vector<1x128xf32> to vector<16x128xf32>
    %20 = arith.addf %16, %19 : vector<16x128xf32>
    %cst_15 = arith.constant 0.000000e+00 : f32
    %21 = vector.broadcast %cst_15 : f32 to vector<16x128xf32>
    %22 = arith.cmpf oge, %20, %21 : vector<16x128xf32>
    %cst_16 = arith.constant 2.000000e-01 : f32
    %23 = vector.broadcast %cst_16 : f32 to vector<16x128xf32>
    %24 = arith.mulf %23, %20 : vector<16x128xf32>
    %25 = arith.select %22, %20, %24 : vector<16x128xi1>, vector<16x128xf32>
    %26 = arith.truncf %25 : vector<16x128xf32> to vector<16x128xbf16>
    %c2 = arith.constant 2 : index
    %c0_17 = arith.constant 0 : index
    %c0_18 = arith.constant 0 : index
    %27 = vector.load %arg2[%c2, %c0_17, %c0_18] : memref<3x128x128xbf16, #tpu.memory_space<vmem>>, vector<1x128x128xbf16>
    %28 = vector.shape_cast %27 : vector<1x128x128xbf16> to vector<128x128xbf16>
    %cst_19 = arith.constant dense<0.000000e+00> : vector<16x128xf32>
    %29 = tpu.matmul %26, %28, %cst_19 {dimension_numbers = #tpu.dot_dimension_numbers<[1], [0], [0], [1], [0, 0, 1, 1], [], []>} : vector<16x128xbf16>, vector<128x128xbf16>, vector<16x128xf32> -> vector<16x128xf32>
    %c2_20 = arith.constant 2 : index
    %c0_21 = arith.constant 0 : index
    %c0_22 = arith.constant 0 : index
    %30 = vector.load %arg3[%c2_20, %c0_21, %c0_22] : memref<3x1x128xf32, #tpu.memory_space<vmem>>, vector<1x1x128xf32>
    %31 = vector.shape_cast %30 : vector<1x1x128xf32> to vector<1x128xf32>
    %32 = vector.broadcast %31 : vector<1x128xf32> to vector<16x128xf32>
    %33 = arith.addf %29, %32 : vector<16x128xf32>
    %c0_23 = arith.constant 0 : index
    %c0_24 = arith.constant 0 : index
    %34 = vector.load %arg4[%c0_23, %c0_24] : memref<16x128xf32, #tpu.memory_space<vmem>>, vector<16x128xf32>
    tpu.vector_store %arg4[%c0_23, %c0_24], %33 {strides = array<i32>} : memref<16x128xf32, #tpu.memory_space<vmem>>, vector<16x128xf32>,
    return
  }
  func.func @transform_0(%arg0: i32) -> (i32, i32) {
    %c0_i32 = arith.constant 0 : i32
    %c0_i32_0 = arith.constant 0 : i32
    return %arg0, %c0_i32 : i32, i32
  }
  func.func @transform_1(%arg0: i32) -> (i32, i32, i32) {
    %c0_i32 = arith.constant 0 : i32
    %c0_i32_0 = arith.constant 0 : i32
    %c0_i32_1 = arith.constant 0 : i32
    %c0_i32_2 = arith.constant 0 : i32
    return %c0_i32, %c0_i32_0, %c0_i32_1 : i32, i32, i32
  }
  func.func @transform_2(%arg0: i32) -> (i32, i32, i32) {
    %c0_i32 = arith.constant 0 : i32
    %c0_i32_0 = arith.constant 0 : i32
    %c0_i32_1 = arith.constant 0 : i32
    %c0_i32_2 = arith.constant 0 : i32
    return %c0_i32, %c0_i32_0, %c0_i32_1 : i32, i32, i32
  }
  func.func @transform_3(%arg0: i32) -> (i32, i32) {
    %c0_i32 = arith.constant 0 : i32
    %c0_i32_0 = arith.constant 0 : i32
    return %arg0, %c0_i32 : i32, i32
  }
}

</mosaic_0001>

<llo_original>
// kernel: tpu_custom_call.1
$region0: #{tpu_custom_call.1}
  #allocation0 [shape = 'u32[]', space=smem, size = 0x4, offset = 0x4, fixed_abs, tag = 'smem constant byte address 0x4 - core index']
  #allocation1 [shape = 'u32[144,128]{1,0:T(1,128)}', space=vmem, size = 0x12000, scoped, tag = 'internal scratch']
  %s0 = inlined_call_operand.hbm [shape: bf16[16,128], index: 0, kind: input, shape index: {}]
  %s1 = inlined_call_operand.hbm [shape: bf16[3,128,128], index: 1, kind: input, shape index: {}]
  %s2 = inlined_call_operand.vmem [shape: f32[3,1,128], index: 2, kind: input, shape index: {}]
  %s3 = inlined_call_operand.hbm [shape: f32[16,128], index: 3, kind: output, shape index: {}]
  %s4 = sld [smem:[#allocation0]]
  $region30: #{tpu_custom_call.1} parent=0
    _
  %s6 = ssub.s32 1, %s4
  %s7 = scalar_select 0, %s6, %s4
  $region1: #{tpu_custom_call.1} parent=0
    #allocation2 [shape = 'u8[4096]{0}', space=vmem, size = 0x1000, scoped, tag = 'input window, operand 0, single buffered']
    #allocation3 [shape = 's32[1]{0}', space=sflag, size = 0x4, scoped, tag = 'scoped memory for tpu_custom_call.1']
    #allocation4 [shape = 's32[1]{0}', space=sflag, size = 0x4, scoped, tag = 'scoped memory for tpu_custom_call.1']
    #allocation5 [shape = 'u8[98304]{0}', space=vmem, size = 0x18000, scoped, tag = 'input window, operand 1, single buffered']
    #allocation6 [shape = 's32[1]{0}', space=sflag, size = 0x4, scoped, tag = 'scoped memory for tpu_custom_call.1']
    #allocation7 [shape = 'u8[8192]{0}', space=vmem, size = 0x2000, scoped, tag = 'output window, operand 0, single buffered']
    %8 = vsyncpa [#allocation3], 0
    %9 = vsyncpa [#allocation6], 0
    %10 = vsyncpa [#allocation4], 0
    // Predicated region
    $region2: #{tpu_custom_call.1} parent=1 // pred_check
      _
    $region3: #{tpu_custom_call.1} parent=1 // pred_check_branch
      %12 = sbr.rel (0) target = $region5
    $region4: #{tpu_custom_call.1} parent=1 // pred_region
      %s14 = ssub.s32 128, 128
      %15 = vsyncadd [#allocation3], %s14
      %s16 = sshll.u32 [#allocation2], 4
      %s17 = int_to_ptr.vmem [resolvable:$true] %s16
      %22 = dma.hbm_to_vmem [thread:$0]  %s0, 128, %s17, [#allocation3], 64, 64, 4
    $region5: #{tpu_custom_call.1} parent=1 // pred_fallthru
      _
    // Predicated region
    $region6: #{tpu_custom_call.1} parent=1 // pred_check
      _
    $region7: #{tpu_custom_call.1} parent=1 // pred_check_branch
      %24 = sbr.rel (0) target = $region9
    $region8: #{tpu_custom_call.1} parent=1 // pred_region
      %s26 = ssub.s32 3072, 3072
      %27 = vsyncadd [#allocation6], %s26
      %s28 = sshll.u32 [#allocation5], 4
      %s29 = int_to_ptr.vmem [resolvable:$true] %s28
      %34 = dma.hbm_to_vmem [thread:$0]  %s1, 3072, %s29, [#allocation6], 64, 64, 4
    $region9: #{tpu_custom_call.1} parent=1 // pred_fallthru
      _
    // Predicated region
    $region10: #{tpu_custom_call.1} parent=1 // pred_check
      _
    $region11: #{tpu_custom_call.1} parent=1 // pred_check_branch
      %36 = sbr.rel (0) target = $region13
    $region12: #{tpu_custom_call.1} parent=1 // pred_region
      _
    $region13: #{tpu_custom_call.1} parent=1 // pred_fallthru
      _
    // Predicated region
    $region14: #{tpu_custom_call.1} parent=1 // pred_check
      _
    $region15: #{tpu_custom_call.1} parent=1 // pred_check_branch
      %38 = sbr.rel (0) target = $region17
    $region16: #{tpu_custom_call.1} parent=1 // pred_region
      %39 = dma.done [#allocation3], 128
    $region17: #{tpu_custom_call.1} parent=1 // pred_fallthru
      _
    // Predicated region
    $region18: #{tpu_custom_call.1} parent=1 // pred_check
      _
    $region19: #{tpu_custom_call.1} parent=1 // pred_check_branch
      %41 = sbr.rel (0) target = $region21
    $region20: #{tpu_custom_call.1} parent=1 // pred_region
      %42 = dma.done [#allocation6], 3072
    $region21: #{tpu_custom_call.1} parent=1 // pred_fallthru
      _
    %v44 = vld [vmem:[#allocation2] sm:$0xf]
    %v45 = vld [vmem:[#allocation2 + $0x4] sm:$0xf]
    %v46 = vld [vmem:[#allocation5] sm:$0xf]
    %v47 = vld [vmem:[#allocation5 + $0x4] sm:$0xf]
    %v48 = vld [vmem:[#allocation5 + $0x8] sm:$0xf]
    %v49 = vld [vmem:[#allocation5 + $0xc] sm:$0xf]
    %v50 = vld [vmem:[#allocation5 + $0x10] sm:$0xf]
    %v51 = vld [vmem:[#allocation5 + $0x14] sm:$0xf]
    %v52 = vld [vmem:[#allocation5 + $0x18] sm:$0xf]
    %v53 = vld [vmem:[#allocation5 + $0x1c] sm:$0xf]
    %v54 = vld [vmem:[#allocation5 + $0x20] sm:$0xf]
    %v55 = vld [vmem:[#allocation5 + $0x24] sm:$0xf]
    %v56 = vld [vmem:[#allocation5 + $0x28] sm:$0xf]
    %v57 = vld [vmem:[#allocation5 + $0x2c] sm:$0xf]
    %v58 = vld [vmem:[#allocation5 + $0x30] sm:$0xf]
    %v59 = vld [vmem:[#allocation5 + $0x34] sm:$0xf]
    %v60 = vld [vmem:[#allocation5 + $0x38] sm:$0xf]
    %v61 = vld [vmem:[#allocation5 + $0x3c] sm:$0xf]
    %v62 = vld [vmem:[%s2] sm:$0x1]
    %v64 = vlaneseq
    %v65 = vshrl.u32 %v64, 7
    %v66 = vsub.s32 0, %v65
    %v67 = vrot.slane %v62, %v66
    %v71 = vunpack.c.l.b16 %v44
    %v72 = vunpack.c.l.b16 %v45
    %v73 = vpack.c.b16 %v72, %v71
    %v91 = vunpack.c.l.b16 %v46
    %v92 = vunpack.c.l.b16 %v47
    %v93 = vunpack.c.l.b16 %v48
    %v94 = vunpack.c.l.b16 %v49
    %v95 = vunpack.c.l.b16 %v50
    %v96 = vunpack.c.l.b16 %v51
    %v97 = vunpack.c.l.b16 %v52
    %v98 = vunpack.c.l.b16 %v53
    %v99 = vunpack.c.l.b16 %v54
    %v100 = vunpack.c.l.b16 %v55
    %v101 = vunpack.c.l.b16 %v56
    %v102 = vunpack.c.l.b16 %v57
    %v103 = vunpack.c.l.b16 %v58
    %v104 = vunpack.c.l.b16 %v59
    %v105 = vunpack.c.l.b16 %v60
    %v106 = vunpack.c.l.b16 %v61
    %v107 = vpack.c.b16 %v92, %v91
    %v108 = vpack.c.b16 %v94, %v93
    %v109 = vpack.c.b16 %v96, %v95
    %v110 = vpack.c.b16 %v98, %v97
    %v111 = vpack.c.b16 %v100, %v99
    %v112 = vpack.c.b16 %v102, %v101
    %v113 = vpack.c.b16 %v104, %v103
    %v114 = vpack.c.b16 %v106, %v105
    %123 = vmatprep.subr.bf16.mxu0 0
    %124 = vmatpush1.bf16.msra.mxu0 %v107
    %125 = vmatprep.subr.bf16.mxu0 0
    %126 = vmatpush1.bf16.msra.mxu0 %v108
    %127 = vmatprep.subr.bf16.mxu0 0
    %128 = vmatpush1.bf16.msra.mxu0 %v109
    %129 = vmatprep.subr.bf16.mxu0 0
    %130 = vmatpush1.bf16.msra.mxu0 %v110
    %131 = vmatprep.subr.bf16.mxu0 0
    %132 = vmatpush1.bf16.msra.mxu0 %v111
    %133 = vmatprep.subr.bf16.mxu0 0
    %134 = vmatpush1.bf16.msra.mxu0 %v112
    %135 = vmatprep.subr.bf16.mxu0 0
    %136 = vmatpush1.bf16.msra.mxu0 %v113
    %137 = vmatprep.subr.bf16.mxu0 0
    %138 = vmatpush1.bf16.msra.mxu0 %v114
    %139 = vmatprep.subr.bf16.mxu0 0
    %140 = vmatpush1.bf16.msra.mxu0 0
    %141 = vmatprep.subr.bf16.mxu0 0
    %142 = vmatpush1.bf16.msra.mxu0 0
    %143 = vmatprep.subr.bf16.mxu0 0
    %144 = vmatpush1.bf16.msra.mxu0 0
    %145 = vmatprep.subr.bf16.mxu0 0
    %146 = vmatpush1.bf16.msra.mxu0 0
    %147 = vmatprep.subr.bf16.mxu0 0
    %148 = vmatpush1.bf16.msra.mxu0 0
    %149 = vmatprep.subr.bf16.mxu0 0
    %150 = vmatpush1.bf16.msra.mxu0 0
    %151 = vmatprep.subr.bf16.mxu0 0
    %152 = vmatpush1.bf16.msra.mxu0 0
    %153 = vmatprep.subr.bf16.mxu0 0
    %154 = vmatpush1.bf16.msra.mxu0 0
    %155 = vmatprep.mubr.bf16.mxu0 0
    %156 = vmatmul.mubr.bf16.gmra.mrb[0].mxu0 %v73
    %v157 = vpop.f32.mrb[0].mxu0
    %v158 = vadd.f32 %v67, %v157
    %v159 = vpop.f32.mrb[0].mxu0
    %v160 = vpop.f32.mrb[0].mxu0
    %v161 = vadd.f32 %v67, %v160
    %v162 = vpop.f32.mrb[0].mxu0
    %163 = vdwg.mxu0
    %vm164 = vcmp.ge.f32.partialorder %v158, 0.0
    %vm165 = vcmp.ge.f32.partialorder %v161, 0.0
    %v166 = vmul.f32 %v158, 0.2
    %v167 = vmul.f32 %v161, 0.2
    %v168 = vsel %vm164, %v158, %v166
    %v169 = vsel %vm165, %v161, %v167
    %v170 = vpack.c.bf16 %v169, %v168
    %s171 = scalar_lea.vmem [#allocation5], 64
    %v172 = vld [vmem:[%s171] sm:$0xf]
    %v173 = vld [vmem:[%s171 + $0x4] sm:$0xf]
    %v174 = vld [vmem:[%s171 + $0x8] sm:$0xf]
    %v175 = vld [vmem:[%s171 + $0xc] sm:$0xf]
    %v176 = vld [vmem:[%s171 + $0x10] sm:$0xf]
    %v177 = vld [vmem:[%s171 + $0x14] sm:$0xf]
    %v178 = vld [vmem:[%s171 + $0x18] sm:$0xf]
    %v179 = vld [vmem:[%s171 + $0x1c] sm:$0xf]
    %v180 = vld [vmem:[%s171 + $0x20] sm:$0xf]
    %v181 = vld [vmem:[%s171 + $0x24] sm:$0xf]
    %v182 = vld [vmem:[%s171 + $0x28] sm:$0xf]
    %v183 = vld [vmem:[%s171 + $0x2c] sm:$0xf]
    %v184 = vld [vmem:[%s171 + $0x30] sm:$0xf]
    %v185 = vld [vmem:[%s171 + $0x34] sm:$0xf]
    %v186 = vld [vmem:[%s171 + $0x38] sm:$0xf]
    %v187 = vld [vmem:[%s171 + $0x3c] sm:$0xf]
    %s188 = scalar_lea.vmem %s2, 1
    %v189 = vld [vmem:[%s188] sm:$0x1]
    %v191 = vlaneseq
    %v192 = vshrl.u32 %v191, 7
    %v193 = vsub.s32 0, %v192
    %v194 = vrot.slane %v189, %v193
    %v212 = vunpack.c.l.b16 %v172
    %v213 = vunpack.c.l.b16 %v173
    %v214 = vunpack.c.l.b16 %v174
    %v215 = vunpack.c.l.b16 %v175
    %v216 = vunpack.c.l.b16 %v176
    %v217 = vunpack.c.l.b16 %v177
    %v218 = vunpack.c.l.b16 %v178
    %v219 = vunpack.c.l.b16 %v179
    %v220 = vunpack.c.l.b16 %v180
    %v221 = vunpack.c.l.b16 %v181
    %v222 = vunpack.c.l.b16 %v182
    %v223 = vunpack.c.l.b16 %v183
    %v224 = vunpack.c.l.b16 %v184
    %v225 = vunpack.c.l.b16 %v185
    %v226 = vunpack.c.l.b16 %v186
    %v227 = vunpack.c.l.b16 %v187
    %v228 = vpack.c.b16 %v213, %v212
    %v229 = vpack.c.b16 %v215, %v214
    %v230 = vpack.c.b16 %v217, %v216
    %v231 = vpack.c.b16 %v219, %v218
    %v232 = vpack.c.b16 %v221, %v220
    %v233 = vpack.c.b16 %v223, %v222
    %v234 = vpack.c.b16 %v225, %v224
    %v235 = vpack.c.b16 %v227, %v226
    %244 = vmatprep.subr.bf16.mxu0 0
    %245 = vmatpush1.bf16.msra.mxu0 %v228
    %246 = vmatprep.subr.bf16.mxu0 0
    %247 = vmatpush1.bf16.msra.mxu0 %v229
    %248 = vmatprep.subr.bf16.mxu0 0
    %249 = vmatpush1.bf16.msra.mxu0 %v230
    %250 = vmatprep.subr.bf16.mxu0 0
    %251 = vmatpush1.bf16.msra.mxu0 %v231
    %252 = vmatprep.subr.bf16.mxu0 0
    %253 = vmatpush1.bf16.msra.mxu0 %v232
    %254 = vmatprep.subr.bf16.mxu0 0
    %255 = vmatpush1.bf16.msra.mxu0 %v233
    %256 = vmatprep.subr.bf16.mxu0 0
    %257 = vmatpush1.bf16.msra.mxu0 %v234
    %258 = vmatprep.subr.bf16.mxu0 0
    %259 = vmatpush1.bf16.msra.mxu0 %v235
    %260 = vmatprep.subr.bf16.mxu0 0
    %261 = vmatpush1.bf16.msra.mxu0 0
    %262 = vmatprep.subr.bf16.mxu0 0
    %263 = vmatpush1.bf16.msra.mxu0 0
    %264 = vmatprep.subr.bf16.mxu0 0
    %265 = vmatpush1.bf16.msra.mxu0 0
    %266 = vmatprep.subr.bf16.mxu0 0
    %267 = vmatpush1.bf16.msra.mxu0 0
    %268 = vmatprep.subr.bf16.mxu0 0
    %269 = vmatpush1.bf16.msra.mxu0 0
    %270 = vmatprep.subr.bf16.mxu0 0
    %271 = vmatpush1.bf16.msra.mxu0 0
    %272 = vmatprep.subr.bf16.mxu0 0
    %273 = vmatpush1.bf16.msra.mxu0 0
    %274 = vmatprep.subr.bf16.mxu0 0
    %275 = vmatpush1.bf16.msra.mxu0 0
    %276 = vmatprep.mubr.bf16.mxu0 0
    %277 = vmatmul.mubr.bf16.gmra.mrb[0].mxu0 %v170
    %v278 = vpop.f32.mrb[0].mxu0
    %v279 = vadd.f32 %v194, %v278
    %v280 = vpop.f32.mrb[0].mxu0
    %v281 = vpop.f32.mrb[0].mxu0
    %v282 = vadd.f32 %v194, %v281
    %v283 = vpop.f32.mrb[0].mxu0
    %284 = vdwg.mxu0
    %vm285 = vcmp.ge.f32.partialorder %v279, 0.0
    %vm286 = vcmp.ge.f32.partialorder %v282, 0.0
    %v287 = vmul.f32 %v279, 0.2
    %v288 = vmul.f32 %v282, 0.2
    %v289 = vsel %vm285, %v279, %v287
    %v290 = vsel %vm286, %v282, %v288
    %v291 = vpack.c.bf16 %v290, %v289
    %s292 = scalar_lea.vmem [#allocation5], 128
    %v293 = vld [vmem:[%s292] sm:$0xf]
    %v294 = vld [vmem:[%s292 + $0x4] sm:$0xf]
    %v295 = vld [vmem:[%s292 + $0x8] sm:$0xf]
    %v296 = vld [vmem:[%s292 + $0xc] sm:$0xf]
    %v297 = vld [vmem:[%s292 + $0x10] sm:$0xf]
    %v298 = vld [vmem:[%s292 + $0x14] sm:$0xf]
    %v299 = vld [vmem:[%s292 + $0x18] sm:$0xf]
    %v300 = vld [vmem:[%s292 + $0x1c] sm:$0xf]
    %v301 = vld [vmem:[%s292 + $0x20] sm:$0xf]
    %v302 = vld [vmem:[%s292 + $0x24] sm:$0xf]
    %v303 = vld [vmem:[%s292 + $0x28] sm:$0xf]
    %v304 = vld [vmem:[%s292 + $0x2c] sm:$0xf]
    %v305 = vld [vmem:[%s292 + $0x30] sm:$0xf]
    %v306 = vld [vmem:[%s292 + $0x34] sm:$0xf]
    %v307 = vld [vmem:[%s292 + $0x38] sm:$0xf]
    %v308 = vld [vmem:[%s292 + $0x3c] sm:$0xf]
    %s309 = scalar_lea.vmem %s2, 2
    %v310 = vld [vmem:[%s309] sm:$0x1]
    %v312 = vlaneseq
    %v313 = vshrl.u32 %v312, 7
    %v314 = vsub.s32 0, %v313
    %v315 = vrot.slane %v310, %v314
    %v333 = vunpack.c.l.b16 %v293
    %v334 = vunpack.c.l.b16 %v294
    %v335 = vunpack.c.l.b16 %v295
    %v336 = vunpack.c.l.b16 %v296
    %v337 = vunpack.c.l.b16 %v297
    %v338 = vunpack.c.l.b16 %v298
    %v339 = vunpack.c.l.b16 %v299
    %v340 = vunpack.c.l.b16 %v300
    %v341 = vunpack.c.l.b16 %v301
    %v342 = vunpack.c.l.b16 %v302
    %v343 = vunpack.c.l.b16 %v303
    %v344 = vunpack.c.l.b16 %v304
    %v345 = vunpack.c.l.b16 %v305
    %v346 = vunpack.c.l.b16 %v306
    %v347 = vunpack.c.l.b16 %v307
    %v348 = vunpack.c.l.b16 %v308
    %v349 = vpack.c.b16 %v334, %v333
    %v350 = vpack.c.b16 %v336, %v335
    %v351 = vpack.c.b16 %v338, %v337
    %v352 = vpack.c.b16 %v340, %v339
    %v353 = vpack.c.b16 %v342, %v341
    %v354 = vpack.c.b16 %v344, %v343
    %v355 = vpack.c.b16 %v346, %v345
    %v356 = vpack.c.b16 %v348, %v347
    %365 = vmatprep.subr.bf16.mxu0 0
    %366 = vmatpush1.bf16.msra.mxu0 %v349
    %367 = vmatprep.subr.bf16.mxu0 0
    %368 = vmatpush1.bf16.msra.mxu0 %v350
    %369 = vmatprep.subr.bf16.mxu0 0
    %370 = vmatpush1.bf16.msra.mxu0 %v351
    %371 = vmatprep.subr.bf16.mxu0 0
    %372 = vmatpush1.bf16.msra.mxu0 %v352
    %373 = vmatprep.subr.bf16.mxu0 0
    %374 = vmatpush1.bf16.msra.mxu0 %v353
    %375 = vmatprep.subr.bf16.mxu0 0
    %376 = vmatpush1.bf16.msra.mxu0 %v354
    %377 = vmatprep.subr.bf16.mxu0 0
    %378 = vmatpush1.bf16.msra.mxu0 %v355
    %379 = vmatprep.subr.bf16.mxu0 0
    %380 = vmatpush1.bf16.msra.mxu0 %v356
    %381 = vmatprep.subr.bf16.mxu0 0
    %382 = vmatpush1.bf16.msra.mxu0 0
    %383 = vmatprep.subr.bf16.mxu0 0
    %384 = vmatpush1.bf16.msra.mxu0 0
    %385 = vmatprep.subr.bf16.mxu0 0
    %386 = vmatpush1.bf16.msra.mxu0 0
    %387 = vmatprep.subr.bf16.mxu0 0
    %388 = vmatpush1.bf16.msra.mxu0 0
    %389 = vmatprep.subr.bf16.mxu0 0
    %390 = vmatpush1.bf16.msra.mxu0 0
    %391 = vmatprep.subr.bf16.mxu0 0
    %392 = vmatpush1.bf16.msra.mxu0 0
    %393 = vmatprep.subr.bf16.mxu0 0
    %394 = vmatpush1.bf16.msra.mxu0 0
    %395 = vmatprep.subr.bf16.mxu0 0
    %396 = vmatpush1.bf16.msra.mxu0 0
    %397 = vmatprep.mubr.bf16.mxu0 0
    %398 = vmatmul.mubr.bf16.gmra.mrb[0].mxu0 %v291
    %v399 = vpop.f32.mrb[0].mxu0
    %v400 = vadd.f32 %v315, %v399
    %v401 = vpop.f32.mrb[0].mxu0
    %v402 = vpop.f32.mrb[0].mxu0
    %v403 = vadd.f32 %v315, %v402
    %v404 = vpop.f32.mrb[0].mxu0
    %405 = vdwg.mxu0
    %406 = vst [vmem:[#allocation7] sm:$0xff] %v400
    %407 = vst [vmem:[#allocation7 + $0x8] sm:$0xff] %v403
    // Predicated region
    $region22: #{tpu_custom_call.1} parent=1 // pred_check
      _
    $region23: #{tpu_custom_call.1} parent=1 // pred_check_branch
      %409 = sbr.rel (0) target = $region25
    $region24: #{tpu_custom_call.1} parent=1 // pred_region
      %s411 = ssub.s32 256, 256
      %412 = vsyncadd [#allocation4], %s411
      %s413 = sshll.u32 [#allocation7], 4
      %s414 = int_to_ptr.vmem [resolvable:$true] %s413
      %419 = dma.vmem_to_hbm [thread:$0]  %s414, 256, %s3, [#allocation4], 128, 128, 8
    $region25: #{tpu_custom_call.1} parent=1 // pred_fallthru
      _
    // Predicated region
    $region26: #{tpu_custom_call.1} parent=1 // pred_check
      _
    $region27: #{tpu_custom_call.1} parent=1 // pred_check_branch
      %421 = sbr.rel (0) target = $region29
    $region28: #{tpu_custom_call.1} parent=1 // pred_region
      %422 = dma.done [#allocation4], 256
    $region29: #{tpu_custom_call.1} parent=1 // pred_fallthru
      _
    %423 = vsyncpa [#allocation3], 1
    %424 = vsyncpa [#allocation6], 1
    %425 = vsyncpa [#allocation4], 1

</llo_original>
